<compile_context>
chip_gen: v5e
topology: v5e:2x2
jax: 0.10.0
libtpu: 0.0.40
codegen_flags: <defaults>
</compile_context>

<pallas_src>
import jax
import jax.numpy as jnp
from jax.experimental import pallas as pl
from jax.experimental.pallas import tpu as pltpu


def _dot_t(a, b):
    """a[M, C] . b[N, C]^T -> [M, N], f32 accumulation on the MXU."""
    return jax.lax.dot_general(
        a, b, dimension_numbers=(((1,), (1,)), ((), ())),
        preferred_element_type=jnp.float32)


def deepfm_kernel(val_ref, fw_ref, emb_ref, r_ref, s_ref,
                  w1_ref, b1_ref, w2_ref, b2_ref, w3_ref, b3_ref,
                  woh_ref, sc_ref, out_ref):
    val = val_ref[...]                    # [TB, F]    feature values
    fw = fw_ref[...]                      # [TB, F]    gathered 1st-order weights
    x = emb_ref[...]                      # [TB, F*K]  gathered embeddings (flat)

    # ---- FM first order:  y1[0, b] = sum_f fw[b,f] * val[b,f]   -> [1, TB] ----
    ones_f = jnp.ones((1, val.shape[1]), jnp.float32)
    y1 = _dot_t(ones_f, fw * val)

    # ---- FM second order (matmul form, no per-field unroll) -------------------
    # val_rep[b, f*K+k] = val[b, f]   (field expansion done on the MXU)
    val_rep = jnp.dot(val, r_ref[...], preferred_element_type=jnp.float32)
    fev = x * val_rep                                     # v_{f,k} * x_f
    s_t = _dot_t(s_ref[...], fev)                         # [K, TB] sum_f fev
    q_t = _dot_t(s_ref[...], fev * fev)                   # [K, TB] sum_f fev^2
    y2 = 0.5 * jnp.sum(s_t * s_t - q_t, axis=0, keepdims=True)     # [1, TB]

    # ---- DNN: 3 x (Linear + ReLU), activations kept lane-major [H, TB] --------
    h = jnp.maximum(_dot_t(w1_ref[...], x) + b1_ref[...], 0.0)
    h = jnp.maximum(jnp.dot(w2_ref[...], h, preferred_element_type=jnp.float32)
                    + b2_ref[...], 0.0)
    h = jnp.maximum(jnp.dot(w3_ref[...], h, preferred_element_type=jnp.float32)
                    + b3_ref[...], 0.0)

    # ---- Output layer: sigmoid( wo[0]*(fm_bias + y1 + y2) + wo[1:].h + bo ) ---
    # host-side folded scalars: sc = [[wo[0], wo[0]*fm_bias + bo]]
    sc = sc_ref[...]                                      # [1, 2]
    wofm = sc[:, 0:1]                                     # [1, 1]
    c0 = sc[:, 1:2]                                       # [1, 1]
    logit = ((y1 + y2) * wofm
             + jnp.dot(woh_ref[...], h, preferred_element_type=jnp.float32)
             + c0)                                        # [1, TB]
    out_ref[...] = jax.nn.sigmoid(logit).reshape(out_ref.shape)


def deepfm_forward(feat_index, feat_value, params, *, emb_dim, num_fields,
                   tile_b=1024):
    B = feat_index.shape[0]
    F, K = num_fields, emb_dim
    FK = F * K
    H1 = params["w1"].shape[1]
    H2 = params["w2"].shape[1]
    H3 = params["w3"].shape[1]

    # TODO(synk): the nn.Embedding gathers stay in plain JAX glue; fusing the
    # data-dependent HBM gather into the kernel (scalar-prefetched indices +
    # manual DMA) would remove one write+read of the [B, F*K] slab.
    # TODO(synk): embeddings could be streamed as bf16 to halve HBM traffic, but
    # that changes numerics vs the f32 PyTorch module, so f32 is kept here.
    feat_emb = params["emb_table"][feat_index]                    # [B, F, K]
    dnn_in = feat_emb.reshape(B, FK).astype(jnp.float32)          # [B, F*K]
    fw = params["first_order"][feat_index].astype(jnp.float32)    # [B, F]
    fv = feat_value.astype(jnp.float32)                           # [B, F]

    # Batch tile: large (the kernel is HBM-bound, so amortize per-step overhead),
    # lane aligned (multiple of 128), clamped for small batches; tail is padded.
    # For v7x keep B/tile_b >= a few steps so both TensorCores get work.
    tile_b = max(128, (int(tile_b) // 128) * 128)
    tb = min(tile_b, ((B + 127) // 128) * 128)
    num_tiles = (B + tb - 1) // tb
    b_pad = num_tiles * tb
    if b_pad != B:
        pad = ((0, b_pad - B), (0, 0))
        fv = jnp.pad(fv, pad)
        fw = jnp.pad(fw, pad)
        dnn_in = jnp.pad(dnn_in, pad)

    # Constant 0/1 FM helper matrices + host-side folded / transposed weights.
    f32 = jnp.float32
    R = jnp.kron(jnp.eye(F, dtype=f32), jnp.ones((1, K), f32))        # [F, F*K]
    S = jnp.kron(jnp.ones((1, F), f32), jnp.eye(K, dtype=f32))        # [K, F*K]
    w1_t = params["w1"].T                                             # [H1, F*K]
    w2_t = params["w2"].T                                             # [H2, H1]
    w3_t = params["w3"].T                                             # [H3, H2]
    b1_c = params["b1"].reshape(H1, 1)
    b2_c = params["b2"].reshape(H2, 1)
    b3_c = params["b3"].reshape(H3, 1)
    wo = params["wo"]
    woh_row = wo[1:, :].T                                             # [1, H3]
    wofm = wo[0, 0]
    sc = jnp.stack([wofm,
                    wofm * params["fm_bias"][0, 0] + params["bo"][0, 0]]
                   ).reshape(1, 2)                                    # [1, 2]

    row = lambda i: (i, 0)
    bcast = lambda i: (0, 0)

    out = pl.pallas_call(
        deepfm_kernel,
        out_shape=jax.ShapeDtypeStruct((num_tiles, 1, tb), jnp.float32),
        grid=(num_tiles,),
        in_specs=[
            pl.BlockSpec((tb, F), row),        # feature values
            pl.BlockSpec((tb, F), row),        # gathered first-order weights
            pl.BlockSpec((tb, FK), row),       # gathered embeddings (flattened)
            pl.BlockSpec((F, FK), bcast),      # R: field-expansion matrix
            pl.BlockSpec((K, FK), bcast),      # S: field-summing matrix
            pl.BlockSpec((H1, FK), bcast),     # W1^T
            pl.BlockSpec((H1, 1), bcast),      # b1
            pl.BlockSpec((H2, H1), bcast),     # W2^T
            pl.BlockSpec((H2, 1), bcast),      # b2
            pl.BlockSpec((H3, H2), bcast),     # W3^T
            pl.BlockSpec((H3, 1), bcast),      # b3
            pl.BlockSpec((1, H3), bcast),      # Wo[1:]^T
            pl.BlockSpec((1, 2), bcast),       # [wo_fm, wo_fm*fm_bias + bo]
        ],
        out_specs=pl.BlockSpec((1, 1, tb), lambda i: (i, 0, 0)),
        compiler_params=pltpu.CompilerParams(
            dimension_semantics=("parallel",)),
    )(fv, fw, dnn_in, R, S, w1_t, b1_c, w2_t, b2_c, w3_t, b3_c, woh_row, sc)

    return out.reshape(b_pad, 1)[:B]


def init_params(key, feat_dim, emb_dim, num_fields, fc_dims):
    H1, H2, H3 = fc_dims
    ks = jax.random.split(key, 11)
    s = 0.1
    return {
        "emb_table": jax.random.normal(ks[0], (feat_dim, emb_dim), jnp.float32) * s,
        "first_order": jax.random.normal(ks[1], (feat_dim,), jnp.float32) * s,
        "fm_bias": jax.random.normal(ks[2], (1, 1), jnp.float32) * s,
        "w1": jax.random.normal(ks[3], (emb_dim * num_fields, H1), jnp.float32) * s,
        "b1": jax.random.normal(ks[4], (1, H1), jnp.float32) * s,
        "w2": jax.random.normal(ks[5], (H1, H2), jnp.float32) * s,
        "b2": jax.random.normal(ks[6], (1, H2), jnp.float32) * s,
        "w3": jax.random.normal(ks[7], (H2, H3), jnp.float32) * s,
        "b3": jax.random.normal(ks[8], (1, H3), jnp.float32) * s,
        "wo": jax.random.normal(ks[9], (H3 + 1, 1), jnp.float32) * s,
        "bo": jax.random.normal(ks[10], (1, 1), jnp.float32) * s,
    }


def deepfm_reference(feat_index, feat_value, params):
    """Pure-JAX mirror of the PyTorch forward pass, for verification."""
    emb = params["emb_table"][feat_index]                  # [B, F, K]
    fw = params["first_order"][feat_index]                 # [B, F]
    y1 = jnp.sum(fw * feat_value, axis=1)                  # [B]
    fev = emb * feat_value[:, :, None]                     # [B, F, K]
    sos = jnp.sum(fev, axis=1) ** 2
    ssq = jnp.sum(fev ** 2, axis=1)
    y2 = 0.5 * jnp.sum(sos - ssq, axis=1)                  # [B]
    y_fm = params["fm_bias"][0, 0] + y1 + y2               # [B]
    B = feat_index.shape[0]
    dnn_in = emb.reshape(B, -1)
    h = jax.nn.relu(dnn_in @ params["w1"] + params["b1"])
    h = jax.nn.relu(h @ params["w2"] + params["b2"])
    h = jax.nn.relu(h @ params["w3"] + params["b3"])
    ycat = jnp.concatenate([y_fm[:, None], h], axis=1)     # [B, H+1]
    return jax.nn.sigmoid(ycat @ params["wo"] + params["bo"])  # [B, 1]


if __name__ == "__main__":
    key = jax.random.PRNGKey(0)
    fc_dims = [32, 32, 32]

    # (B, num_fields, emb_dim, feat_dim, tile_b): first case = single padded tile,
    # second case = multiple tiles plus a ragged (padded) tail.
    for (B, num_fields, emb_dim, feat_dim, tile_b) in [
        (16, 8, 8, 64, 1024),
        (300, 8, 8, 64, 128),
    ]:
        key, kp, ki, kv = jax.random.split(key, 4)
        params = init_params(kp, feat_dim, emb_dim, num_fields, fc_dims)
        feat_index = jax.random.randint(ki, (B, num_fields), 0, feat_dim,
                                        dtype=jnp.int32)
        feat_value = jax.random.uniform(kv, (B, num_fields), dtype=jnp.float32)

        out = deepfm_forward(feat_index, feat_value, params,
                             emb_dim=emb_dim, num_fields=num_fields,
                             tile_b=tile_b)
        out = jax.block_until_ready(out)

        ref = deepfm_reference(feat_index, feat_value, params)
        assert out.shape == (B, 1), out.shape
        assert jnp.allclose(out, ref, rtol=1e-5, atol=1e-5), \
            float(jnp.max(jnp.abs(out - ref)))

    print("KERNEL_OK")
</pallas_src>

<mosaic_0001>
module attributes {stable_mosaic.version = 11 : i64} {
  func.func @deepfm_kernel(%arg0: i32, %arg1: memref<128x8xf32, #tpu.memory_space<vmem>>, %arg2: memref<128x8xf32, #tpu.memory_space<vmem>>, %arg3: memref<128x64xf32, #tpu.memory_space<vmem>>, %arg4: memref<8x64xf32, #tpu.memory_space<vmem>>, %arg5: memref<8x64xf32, #tpu.memory_space<vmem>>, %arg6: memref<32x64xf32, #tpu.memory_space<vmem>>, %arg7: memref<32x1xf32, #tpu.memory_space<vmem>>, %arg8: memref<32x32xf32, #tpu.memory_space<vmem>>, %arg9: memref<32x1xf32, #tpu.memory_space<vmem>>, %arg10: memref<32x32xf32, #tpu.memory_space<vmem>>, %arg11: memref<32x1xf32, #tpu.memory_space<vmem>>, %arg12: memref<1x32xf32, #tpu.memory_space<vmem>>, %arg13: memref<1x2xf32, #tpu.memory_space<vmem>>, %arg14: memref<1x1x128xf32, #tpu.memory_space<vmem>>) attributes {dimension_semantics = [#tpu.dimension_semantics<parallel>], iteration_bounds = array<i64: 1>, scalar_prefetch = 0 : i64, scratch_operands = 0 : i64, tpu.core_type = #tpu.core_type<tc>, window_params = [{transform_indices = @transform_0, window_bounds = array<i64: 128, 8>}, {transform_indices = @transform_1, window_bounds = array<i64: 128, 8>}, {transform_indices = @transform_2, window_bounds = array<i64: 128, 64>}, {pipeline_mode = #tpu.pipeline_mode<synchronous>, transform_indices = @transform_3, window_bounds = array<i64: 8, 64>}, {pipeline_mode = #tpu.pipeline_mode<synchronous>, transform_indices = @transform_4, window_bounds = array<i64: 8, 64>}, {pipeline_mode = #tpu.pipeline_mode<synchronous>, transform_indices = @transform_5, window_bounds = array<i64: 32, 64>}, {pipeline_mode = #tpu.pipeline_mode<synchronous>, transform_indices = @transform_6, window_bounds = array<i64: 32, 1>}, {pipeline_mode = #tpu.pipeline_mode<synchronous>, transform_indices = @transform_7, window_bounds = array<i64: 32, 32>}, {pipeline_mode = #tpu.pipeline_mode<synchronous>, transform_indices = @transform_8, window_bounds = array<i64: 32, 1>}, {pipeline_mode = #tpu.pipeline_mode<synchronous>, transform_indices = @transform_9, window_bounds = array<i64: 32, 32>}, {pipeline_mode = #tpu.pipeline_mode<synchronous>, transform_indices = @transform_10, window_bounds = array<i64: 32, 1>}, {pipeline_mode = #tpu.pipeline_mode<synchronous>, transform_indices = @transform_11, window_bounds = array<i64: 1, 32>}, {pipeline_mode = #tpu.pipeline_mode<synchronous>, transform_indices = @transform_12, window_bounds = array<i64: 1, 2>}, {transform_indices = @transform_13, window_bounds = array<i64: 1, 1, 128>}]} {
    %c0 = arith.constant 0 : index
    %c0_0 = arith.constant 0 : index
    %0 = vector.load %arg1[%c0, %c0_0] : memref<128x8xf32, #tpu.memory_space<vmem>>, vector<128x8xf32>
    %c0_1 = arith.constant 0 : index
    %c0_2 = arith.constant 0 : index
    %1 = vector.load %arg2[%c0_1, %c0_2] : memref<128x8xf32, #tpu.memory_space<vmem>>, vector<128x8xf32>
    %c0_3 = arith.constant 0 : index
    %c0_4 = arith.constant 0 : index
    %2 = vector.load %arg3[%c0_3, %c0_4] : memref<128x64xf32, #tpu.memory_space<vmem>>, vector<128x64xf32>
    %cst = arith.constant 1.000000e+00 : f32
    %3 = vector.broadcast %cst : f32 to vector<1x8xf32>
    %4 = arith.mulf %1, %0 : vector<128x8xf32>
    %cst_5 = arith.constant dense<0.000000e+00> : vector<1x128xf32>
    %5 = tpu.matmul %3, %4, %cst_5 {dimension_numbers = #tpu.dot_dimension_numbers<[1], [1], [0], [0], [0, 0, 1, 0], [], []>} : vector<1x8xf32>, vector<128x8xf32>, vector<1x128xf32> -> vector<1x128xf32>
    %c0_6 = arith.constant 0 : index
    %c0_7 = arith.constant 0 : index
    %6 = vector.load %arg4[%c0_6, %c0_7] : memref<8x64xf32, #tpu.memory_space<vmem>>, vector<8x64xf32>
    %cst_8 = arith.constant dense<0.000000e+00> : vector<128x64xf32>
    %7 = tpu.matmul %0, %6, %cst_8 {dimension_numbers = #tpu.dot_dimension_numbers<[1], [0], [0], [1], [0, 0, 1, 1], [], []>} : vector<128x8xf32>, vector<8x64xf32>, vector<128x64xf32> -> vector<128x64xf32>
    %8 = arith.mulf %2, %7 : vector<128x64xf32>
    %c0_9 = arith.constant 0 : index
    %c0_10 = arith.constant 0 : index
    %9 = vector.load %arg5[%c0_9, %c0_10] : memref<8x64xf32, #tpu.memory_space<vmem>>, vector<8x64xf32>
    %cst_11 = arith.constant dense<0.000000e+00> : vector<8x128xf32>
    %10 = tpu.matmul %9, %8, %cst_11 {dimension_numbers = #tpu.dot_dimension_numbers<[1], [1], [0], [0], [0, 0, 1, 0], [], []>} : vector<8x64xf32>, vector<128x64xf32>, vector<8x128xf32> -> vector<8x128xf32>
    %c0_12 = arith.constant 0 : index
    %c0_13 = arith.constant 0 : index
    %11 = vector.load %arg5[%c0_12, %c0_13] : memref<8x64xf32, #tpu.memory_space<vmem>>, vector<8x64xf32>
    %12 = arith.mulf %8, %8 : vector<128x64xf32>
    %cst_14 = arith.constant dense<0.000000e+00> : vector<8x128xf32>
    %13 = tpu.matmul %11, %12, %cst_14 {dimension_numbers = #tpu.dot_dimension_numbers<[1], [1], [0], [0], [0, 0, 1, 0], [], []>} : vector<8x64xf32>, vector<128x64xf32>, vector<8x128xf32> -> vector<8x128xf32>
    %14 = arith.mulf %10, %10 : vector<8x128xf32>
    %15 = arith.subf %14, %13 : vector<8x128xf32>
    %cst_15 = arith.constant dense<0.000000e+00> : vector<128xf32>
    %16 = vector.multi_reduction <add>, %15, %cst_15 [0] : vector<8x128xf32> to vector<128xf32>
    %17 = vector.shape_cast %16 : vector<128xf32> to vector<1x128xf32>
    %cst_16 = arith.constant 5.000000e-01 : f32
    %18 = vector.broadcast %cst_16 : f32 to vector<1x128xf32>
    %19 = arith.mulf %18, %17 : vector<1x128xf32>
    %c0_17 = arith.constant 0 : index
    %c0_18 = arith.constant 0 : index
    %20 = vector.load %arg6[%c0_17, %c0_18] : memref<32x64xf32, #tpu.memory_space<vmem>>, vector<32x64xf32>
    %cst_19 = arith.constant dense<0.000000e+00> : vector<32x128xf32>
    %21 = tpu.matmul %20, %2, %cst_19 {dimension_numbers = #tpu.dot_dimension_numbers<[1], [1], [0], [0], [0, 0, 1, 0], [], []>} : vector<32x64xf32>, vector<128x64xf32>, vector<32x128xf32> -> vector<32x128xf32>
    %c0_20 = arith.constant 0 : index
    %c0_21 = arith.constant 0 : index
    %22 = vector.load %arg7[%c0_20, %c0_21] : memref<32x1xf32, #tpu.memory_space<vmem>>, vector<32x1xf32>
    %23 = vector.broadcast %22 : vector<32x1xf32> to vector<32x128xf32>
    %24 = arith.addf %21, %23 : vector<32x128xf32>
    %cst_22 = arith.constant 0.000000e+00 : f32
    %25 = vector.broadcast %cst_22 : f32 to vector<32x128xf32>
    %26 = arith.maximumf %24, %25 : vector<32x128xf32>
    %c0_23 = arith.constant 0 : index
    %c0_24 = arith.constant 0 : index
    %27 = vector.load %arg8[%c0_23, %c0_24] : memref<32x32xf32, #tpu.memory_space<vmem>>, vector<32x32xf32>
    %cst_25 = arith.constant dense<0.000000e+00> : vector<32x128xf32>
    %28 = tpu.matmul %27, %26, %cst_25 {dimension_numbers = #tpu.dot_dimension_numbers<[1], [0], [0], [1], [0, 0, 1, 1], [], []>} : vector<32x32xf32>, vector<32x128xf32>, vector<32x128xf32> -> vector<32x128xf32>
    %c0_26 = arith.constant 0 : index
    %c0_27 = arith.constant 0 : index
    %29 = vector.load %arg9[%c0_26, %c0_27] : memref<32x1xf32, #tpu.memory_space<vmem>>, vector<32x1xf32>
    %30 = vector.broadcast %29 : vector<32x1xf32> to vector<32x128xf32>
    %31 = arith.addf %28, %30 : vector<32x128xf32>
    %cst_28 = arith.constant 0.000000e+00 : f32
    %32 = vector.broadcast %cst_28 : f32 to vector<32x128xf32>
    %33 = arith.maximumf %31, %32 : vector<32x128xf32>
    %c0_29 = arith.constant 0 : index
    %c0_30 = arith.constant 0 : index
    %34 = vector.load %arg10[%c0_29, %c0_30] : memref<32x32xf32, #tpu.memory_space<vmem>>, vector<32x32xf32>
    %cst_31 = arith.constant dense<0.000000e+00> : vector<32x128xf32>
    %35 = tpu.matmul %34, %33, %cst_31 {dimension_numbers = #tpu.dot_dimension_numbers<[1], [0], [0], [1], [0, 0, 1, 1], [], []>} : vector<32x32xf32>, vector<32x128xf32>, vector<32x128xf32> -> vector<32x128xf32>
    %c0_32 = arith.constant 0 : index
    %c0_33 = arith.constant 0 : index
    %36 = vector.load %arg11[%c0_32, %c0_33] : memref<32x1xf32, #tpu.memory_space<vmem>>, vector<32x1xf32>
    %37 = vector.broadcast %36 : vector<32x1xf32> to vector<32x128xf32>
    %38 = arith.addf %35, %37 : vector<32x128xf32>
    %cst_34 = arith.constant 0.000000e+00 : f32
    %39 = vector.broadcast %cst_34 : f32 to vector<32x128xf32>
    %40 = arith.maximumf %38, %39 : vector<32x128xf32>
    %c0_35 = arith.constant 0 : index
    %c0_36 = arith.constant 0 : index
    %41 = vector.load %arg13[%c0_35, %c0_36] : memref<1x2xf32, #tpu.memory_space<vmem>>, vector<1x2xf32>
    %42 = vector.extract_strided_slice %41 {offsets = [0, 0], sizes = [1, 1], strides = [1, 1]} : vector<1x2xf32> to vector<1x1xf32>
    %43 = vector.extract_strided_slice %41 {offsets = [0, 1], sizes = [1, 1], strides = [1, 1]} : vector<1x2xf32> to vector<1x1xf32>
    %44 = arith.addf %5, %19 : vector<1x128xf32>
    %45 = vector.broadcast %42 : vector<1x1xf32> to vector<1x128xf32>
    %46 = arith.mulf %44, %45 : vector<1x128xf32>
    %c0_37 = arith.constant 0 : index
    %c0_38 = arith.constant 0 : index
    %47 = vector.load %arg12[%c0_37, %c0_38] : memref<1x32xf32, #tpu.memory_space<vmem>>, vector<1x32xf32>
    %cst_39 = arith.constant dense<0.000000e+00> : vector<1x128xf32>
    %48 = tpu.matmul %47, %40, %cst_39 {dimension_numbers = #tpu.dot_dimension_numbers<[1], [0], [0], [1], [0, 0, 1, 1], [], []>} : vector<1x32xf32>, vector<32x128xf32>, vector<1x128xf32> -> vector<1x128xf32>
    %49 = arith.addf %46, %48 : vector<1x128xf32>
    %50 = vector.broadcast %43 : vector<1x1xf32> to vector<1x128xf32>
    %51 = arith.addf %49, %50 : vector<1x128xf32>
    %52 = arith.negf %51 : vector<1x128xf32>
    %53 = math.exp %52 : vector<1x128xf32>
    %cst_40 = arith.constant 1.000000e+00 : f32
    %54 = vector.broadcast %cst_40 : f32 to vector<1x128xf32>
    %55 = arith.addf %54, %53 : vector<1x128xf32>
    %56 = arith.divf %54, %55 : vector<1x128xf32>
    %57 = vector.shape_cast %56 : vector<1x128xf32> to vector<1x1x128xf32>
    %c0_41 = arith.constant 0 : index
    %c0_42 = arith.constant 0 : index
    %c0_43 = arith.constant 0 : index
    %58 = vector.load %arg14[%c0_41, %c0_42, %c0_43] : memref<1x1x128xf32, #tpu.memory_space<vmem>>, vector<1x1x128xf32>
    tpu.vector_store %arg14[%c0_41, %c0_42, %c0_43], %57 {strides = array<i32>} : memref<1x1x128xf32, #tpu.memory_space<vmem>>, vector<1x1x128xf32>,
    return
  }
  func.func @transform_0(%arg0: i32) -> (i32, i32) {
    %c0_i32 = arith.constant 0 : i32
    %c0_i32_0 = arith.constant 0 : i32
    return %arg0, %c0_i32 : i32, i32
  }
  func.func @transform_1(%arg0: i32) -> (i32, i32) {
    %c0_i32 = arith.constant 0 : i32
    %c0_i32_0 = arith.constant 0 : i32
    return %arg0, %c0_i32 : i32, i32
  }
  func.func @transform_2(%arg0: i32) -> (i32, i32) {
    %c0_i32 = arith.constant 0 : i32
    %c0_i32_0 = arith.constant 0 : i32
    return %arg0, %c0_i32 : i32, i32
  }
  func.func @transform_3(%arg0: i32) -> (i32, i32) {
    %c0_i32 = arith.constant 0 : i32
    %c0_i32_0 = arith.constant 0 : i32
    %c0_i32_1 = arith.constant 0 : i32
    return %c0_i32, %c0_i32_0 : i32, i32
  }
  func.func @transform_4(%arg0: i32) -> (i32, i32) {
    %c0_i32 = arith.constant 0 : i32
    %c0_i32_0 = arith.constant 0 : i32
    %c0_i32_1 = arith.constant 0 : i32
    return %c0_i32, %c0_i32_0 : i32, i32
  }
  func.func @transform_5(%arg0: i32) -> (i32, i32) {
    %c0_i32 = arith.constant 0 : i32
    %c0_i32_0 = arith.constant 0 : i32
    %c0_i32_1 = arith.constant 0 : i32
    return %c0_i32, %c0_i32_0 : i32, i32
  }
  func.func @transform_6(%arg0: i32) -> (i32, i32) {
    %c0_i32 = arith.constant 0 : i32
    %c0_i32_0 = arith.constant 0 : i32
    %c0_i32_1 = arith.constant 0 : i32
    return %c0_i32, %c0_i32_0 : i32, i32
  }
  func.func @transform_7(%arg0: i32) -> (i32, i32) {
    %c0_i32 = arith.constant 0 : i32
    %c0_i32_0 = arith.constant 0 : i32
    %c0_i32_1 = arith.constant 0 : i32
    return %c0_i32, %c0_i32_0 : i32, i32
  }
  func.func @transform_8(%arg0: i32) -> (i32, i32) {
    %c0_i32 = arith.constant 0 : i32
    %c0_i32_0 = arith.constant 0 : i32
    %c0_i32_1 = arith.constant 0 : i32
    return %c0_i32, %c0_i32_0 : i32, i32
  }
  func.func @transform_9(%arg0: i32) -> (i32, i32) {
    %c0_i32 = arith.constant 0 : i32
    %c0_i32_0 = arith.constant 0 : i32
    %c0_i32_1 = arith.constant 0 : i32
    return %c0_i32, %c0_i32_0 : i32, i32
  }
  func.func @transform_10(%arg0: i32) -> (i32, i32) {
    %c0_i32 = arith.constant 0 : i32
    %c0_i32_0 = arith.constant 0 : i32
    %c0_i32_1 = arith.constant 0 : i32
    return %c0_i32, %c0_i32_0 : i32, i32
  }
  func.func @transform_11(%arg0: i32) -> (i32, i32) {
    %c0_i32 = arith.constant 0 : i32
    %c0_i32_0 = arith.constant 0 : i32
    %c0_i32_1 = arith.constant 0 : i32
    return %c0_i32, %c0_i32_0 : i32, i32
  }
  func.func @transform_12(%arg0: i32) -> (i32, i32) {
    %c0_i32 = arith.constant 0 : i32
    %c0_i32_0 = arith.constant 0 : i32
    %c0_i32_1 = arith.constant 0 : i32
    return %c0_i32, %c0_i32_0 : i32, i32
  }
  func.func @transform_13(%arg0: i32) -> (i32, i32, i32) {
    %c0_i32 = arith.constant 0 : i32
    %c0_i32_0 = arith.constant 0 : i32
    %c0_i32_1 = arith.constant 0 : i32
    return %arg0, %c0_i32, %c0_i32_0 : i32, i32, i32
  }
}

</mosaic_0001>

<llo_original>
// kernel: tpu_custom_call.1
$region0: #{tpu_custom_call.1}
  #allocation0 [shape = 'u32[]', space=smem, size = 0x4, offset = 0x4, fixed_abs, tag = 'smem constant byte address 0x4 - core index']
  #allocation1 [shape = 'u32[72,128]{1,0:T(1,128)}', space=vmem, size = 0x9000, scoped, tag = 'internal scratch']
  %s0 = inlined_call_operand.vmem [shape: f32[128,8], index: 0, kind: input, shape index: {}]
  %s1 = inlined_call_operand.vmem [shape: f32[128,8], index: 1, kind: input, shape index: {}]
  %s2 = inlined_call_operand.vmem [shape: f32[128,64], index: 2, kind: input, shape index: {}]
  %s3 = inlined_call_operand.vmem [shape: f32[8,64], index: 3, kind: input, shape index: {}]
  %s4 = inlined_call_operand.vmem [shape: f32[8,64], index: 4, kind: input, shape index: {}]
  %s5 = inlined_call_operand.vmem [shape: f32[32,64], index: 5, kind: input, shape index: {}]
  %s6 = inlined_call_operand.vmem [shape: f32[32,1], index: 6, kind: input, shape index: {}]
  %s7 = inlined_call_operand.vmem [shape: f32[32,32], index: 7, kind: input, shape index: {}]
  %s8 = inlined_call_operand.vmem [shape: f32[32,1], index: 8, kind: input, shape index: {}]
  %s9 = inlined_call_operand.vmem [shape: f32[32,32], index: 9, kind: input, shape index: {}]
  %s10 = inlined_call_operand.vmem [shape: f32[32,1], index: 10, kind: input, shape index: {}]
  %s11 = inlined_call_operand.vmem [shape: f32[1,32], index: 11, kind: input, shape index: {}]
  %s12 = inlined_call_operand.vmem [shape: f32[1,2], index: 12, kind: input, shape index: {}]
  %s13 = inlined_call_operand.hbm [shape: f32[1,1,128], index: 13, kind: output, shape index: {}]
  %s14 = sld [smem:[#allocation0]]
  $region62: #{tpu_custom_call.1} parent=0
    _
  %s16 = ssub.s32 1, %s14
  %s17 = scalar_select 0, %s16, %s14
  $region1: #{tpu_custom_call.1} parent=0
    #allocation2 [shape = 'u8[512]{0}', space=vmem, size = 0x400, scoped, tag = 'output window, operand 0, single buffered']
    #allocation3 [shape = 's32[1]{0}', space=sflag, size = 0x4, scoped, tag = 'scoped memory for tpu_custom_call.1']
    %18 = vsyncpa [#allocation3], 0
    // Predicated region
    $region2: #{tpu_custom_call.1} parent=1 // pred_check
      _
    $region3: #{tpu_custom_call.1} parent=1 // pred_check_branch
      %20 = sbr.rel (0) target = $region5
    $region4: #{tpu_custom_call.1} parent=1 // pred_region
      _
    $region5: #{tpu_custom_call.1} parent=1 // pred_fallthru
      _
    // Predicated region
    $region6: #{tpu_custom_call.1} parent=1 // pred_check
      _
    $region7: #{tpu_custom_call.1} parent=1 // pred_check_branch
      %22 = sbr.rel (0) target = $region9
    $region8: #{tpu_custom_call.1} parent=1 // pred_region
      _
    $region9: #{tpu_custom_call.1} parent=1 // pred_fallthru
      _
    // Predicated region
    $region10: #{tpu_custom_call.1} parent=1 // pred_check
      _
    $region11: #{tpu_custom_call.1} parent=1 // pred_check_branch
      %24 = sbr.rel (0) target = $region13
    $region12: #{tpu_custom_call.1} parent=1 // pred_region
      _
    $region13: #{tpu_custom_call.1} parent=1 // pred_fallthru
      _
    // Predicated region
    $region14: #{tpu_custom_call.1} parent=1 // pred_check
      _
    $region15: #{tpu_custom_call.1} parent=1 // pred_check_branch
      %26 = sbr.rel (0) target = $region17
    $region16: #{tpu_custom_call.1} parent=1 // pred_region
      _
    $region17: #{tpu_custom_call.1} parent=1 // pred_fallthru
      _
    // Predicated region
    $region18: #{tpu_custom_call.1} parent=1 // pred_check
      _
    $region19: #{tpu_custom_call.1} parent=1 // pred_check_branch
      %28 = sbr.rel (0) target = $region21
    $region20: #{tpu_custom_call.1} parent=1 // pred_region
      _
    $region21: #{tpu_custom_call.1} parent=1 // pred_fallthru
      _
    // Predicated region
    $region22: #{tpu_custom_call.1} parent=1 // pred_check
      _
    $region23: #{tpu_custom_call.1} parent=1 // pred_check_branch
      %30 = sbr.rel (0) target = $region25
    $region24: #{tpu_custom_call.1} parent=1 // pred_region
      _
    $region25: #{tpu_custom_call.1} parent=1 // pred_fallthru
      _
    // Predicated region
    $region26: #{tpu_custom_call.1} parent=1 // pred_check
      _
    $region27: #{tpu_custom_call.1} parent=1 // pred_check_branch
      %32 = sbr.rel (0) target = $region29
    $region28: #{tpu_custom_call.1} parent=1 // pred_region
      _
    $region29: #{tpu_custom_call.1} parent=1 // pred_fallthru
      _
    // Predicated region
    $region30: #{tpu_custom_call.1} parent=1 // pred_check
      _
    $region31: #{tpu_custom_call.1} parent=1 // pred_check_branch
      %34 = sbr.rel (0) target = $region33
    $region32: #{tpu_custom_call.1} parent=1 // pred_region
      _
    $region33: #{tpu_custom_call.1} parent=1 // pred_fallthru
      _
    // Predicated region
    $region34: #{tpu_custom_call.1} parent=1 // pred_check
      _
    $region35: #{tpu_custom_call.1} parent=1 // pred_check_branch
      %36 = sbr.rel (0) target = $region37
    $region36: #{tpu_custom_call.1} parent=1 // pred_region
      _
    $region37: #{tpu_custom_call.1} parent=1 // pred_fallthru
      _
    // Predicated region
    $region38: #{tpu_custom_call.1} parent=1 // pred_check
      _
    $region39: #{tpu_custom_call.1} parent=1 // pred_check_branch
      %38 = sbr.rel (0) target = $region41
    $region40: #{tpu_custom_call.1} parent=1 // pred_region
      _
    $region41: #{tpu_custom_call.1} parent=1 // pred_fallthru
      _
    // Predicated region
    $region42: #{tpu_custom_call.1} parent=1 // pred_check
      _
    $region43: #{tpu_custom_call.1} parent=1 // pred_check_branch
      %40 = sbr.rel (0) target = $region45
    $region44: #{tpu_custom_call.1} parent=1 // pred_region
      _
    $region45: #{tpu_custom_call.1} parent=1 // pred_fallthru
      _
    // Predicated region
    $region46: #{tpu_custom_call.1} parent=1 // pred_check
      _
    $region47: #{tpu_custom_call.1} parent=1 // pred_check_branch
      %42 = sbr.rel (0) target = $region49
    $region48: #{tpu_custom_call.1} parent=1 // pred_region
      _
    $region49: #{tpu_custom_call.1} parent=1 // pred_fallthru
      _
    // Predicated region
    $region50: #{tpu_custom_call.1} parent=1 // pred_check
      _
    $region51: #{tpu_custom_call.1} parent=1 // pred_check_branch
      %44 = sbr.rel (0) target = $region53
    $region52: #{tpu_custom_call.1} parent=1 // pred_region
      _
    $region53: #{tpu_custom_call.1} parent=1 // pred_fallthru
      _
    %v45 = vld [vmem:[%s0] sm:$0xff]
    %v46 = vld [vmem:[%s0 + $0x8] sm:$0xff]
    %v47 = vld [vmem:[%s0 + $0x10] sm:$0xff]
    %v48 = vld [vmem:[%s0 + $0x18] sm:$0xff]
    %v49 = vld [vmem:[%s0 + $0x20] sm:$0xff]
    %v50 = vld [vmem:[%s0 + $0x28] sm:$0xff]
    %v51 = vld [vmem:[%s0 + $0x30] sm:$0xff]
    %v52 = vld [vmem:[%s0 + $0x38] sm:$0xff]
    %v53 = vld [vmem:[%s0 + $0x40] sm:$0xff]
    %v54 = vld [vmem:[%s0 + $0x48] sm:$0xff]
    %v55 = vld [vmem:[%s0 + $0x50] sm:$0xff]
    %v56 = vld [vmem:[%s0 + $0x58] sm:$0xff]
    %v57 = vld [vmem:[%s0 + $0x60] sm:$0xff]
    %v58 = vld [vmem:[%s0 + $0x68] sm:$0xff]
    %v59 = vld [vmem:[%s0 + $0x70] sm:$0xff]
    %v60 = vld [vmem:[%s0 + $0x78] sm:$0xff]
    %v61 = vld [vmem:[%s1] sm:$0xff]
    %v62 = vld [vmem:[%s1 + $0x8] sm:$0xff]
    %v63 = vld [vmem:[%s1 + $0x10] sm:$0xff]
    %v64 = vld [vmem:[%s1 + $0x18] sm:$0xff]
    %v65 = vld [vmem:[%s1 + $0x20] sm:$0xff]
    %v66 = vld [vmem:[%s1 + $0x28] sm:$0xff]
    %v67 = vld [vmem:[%s1 + $0x30] sm:$0xff]
    %v68 = vld [vmem:[%s1 + $0x38] sm:$0xff]
    %v69 = vld [vmem:[%s1 + $0x40] sm:$0xff]
    %v70 = vld [vmem:[%s1 + $0x48] sm:$0xff]
    %v71 = vld [vmem:[%s1 + $0x50] sm:$0xff]
    %v72 = vld [vmem:[%s1 + $0x58] sm:$0xff]
    %v73 = vld [vmem:[%s1 + $0x60] sm:$0xff]
    %v74 = vld [vmem:[%s1 + $0x68] sm:$0xff]
    %v75 = vld [vmem:[%s1 + $0x70] sm:$0xff]
    %v76 = vld [vmem:[%s1 + $0x78] sm:$0xff]
    %v77 = vld [vmem:[%s2] sm:$0xff]
    %v78 = vld [vmem:[%s2 + $0x8] sm:$0xff]
    %v79 = vld [vmem:[%s2 + $0x10] sm:$0xff]
    %v80 = vld [vmem:[%s2 + $0x18] sm:$0xff]
    %v81 = vld [vmem:[%s2 + $0x20] sm:$0xff]
    %v82 = vld [vmem:[%s2 + $0x28] sm:$0xff]
    %v83 = vld [vmem:[%s2 + $0x30] sm:$0xff]
    %v84 = vld [vmem:[%s2 + $0x38] sm:$0xff]
    %v85 = vld [vmem:[%s2 + $0x40] sm:$0xff]
    %v86 = vld [vmem:[%s2 + $0x48] sm:$0xff]
    %v87 = vld [vmem:[%s2 + $0x50] sm:$0xff]
    %v88 = vld [vmem:[%s2 + $0x58] sm:$0xff]
    %v89 = vld [vmem:[%s2 + $0x60] sm:$0xff]
    %v90 = vld [vmem:[%s2 + $0x68] sm:$0xff]
    %v91 = vld [vmem:[%s2 + $0x70] sm:$0xff]
    %v92 = vld [vmem:[%s2 + $0x78] sm:$0xff]
    %v93 = vmul.f32 %v61, %v45
    %v94 = vmul.f32 %v62, %v46
    %v95 = vmul.f32 %v63, %v47
    %v96 = vmul.f32 %v64, %v48
    %v97 = vmul.f32 %v65, %v49
    %v98 = vmul.f32 %v66, %v50
    %v99 = vmul.f32 %v67, %v51
    %v100 = vmul.f32 %v68, %v52
    %v101 = vmul.f32 %v69, %v53
    %v102 = vmul.f32 %v70, %v54
    %v103 = vmul.f32 %v71, %v55
    %v104 = vmul.f32 %v72, %v56
    %v105 = vmul.f32 %v73, %v57
    %v106 = vmul.f32 %v74, %v58
    %v107 = vmul.f32 %v75, %v59
    %v108 = vmul.f32 %v76, %v60
    %v109 = vld [vmem:[%s3] sm:$0xff]
    %vm110 = vcmask 64512
    %v112 = vsel %vm110, %v45, 0
    %v115 = vsel %vm110, %v46, 0
    %v118 = vsel %vm110, %v47, 0
    %v121 = vsel %vm110, %v48, 0
    %v124 = vsel %vm110, %v49, 0
    %v127 = vsel %vm110, %v50, 0
    %v130 = vsel %vm110, %v51, 0
    %v133 = vsel %vm110, %v52, 0
    %v136 = vsel %vm110, %v53, 0
    %v139 = vsel %vm110, %v54, 0
    %v142 = vsel %vm110, %v55, 0
    %v145 = vsel %vm110, %v56, 0
    %v148 = vsel %vm110, %v57, 0
    %v151 = vsel %vm110, %v58, 0
    %v154 = vsel %vm110, %v59, 0
    %v157 = vsel %vm110, %v60, 0
    %159 = vmatpush.msra.mxu0 0.0
    %160 = vmatpush.msra.mxu0 0.0
    %161 = vmatpush.msra.mxu0 0.0
    %162 = vmatpush.msra.mxu0 0.0
    %163 = vmatpush.msra.mxu0 0.0
    %164 = vmatpush.msra.mxu0 0.0
    %165 = vmatpush.msra.mxu0 0.0
    %166 = vmatpush.msra.mxu0 0.0
    %167 = vmatpush.msra.mxu0 0.0
    %168 = vmatpush.msra.mxu0 0.0
    %169 = vmatpush.msra.mxu0 0.0
    %170 = vmatpush.msra.mxu0 0.0
    %171 = vmatpush.msra.mxu0 0.0
    %172 = vmatpush.msra.mxu0 0.0
    %173 = vmatpush.msra.mxu0 0.0
    %174 = vmatpush.msra.mxu0 %v109
    %175 = vmatmul.f32.gmra.mxu0 %v112
    %v176 = vpop.f32.mrf.mxu0
    %v177 = vadd.f32 0.0, %v176
    %178 = vmatmul.f32.gmra.mxu0 %v115
    %v179 = vpop.f32.mrf.mxu0
    %v180 = vadd.f32 0.0, %v179
    %181 = vmatmul.f32.gmra.mxu0 %v118
    %v182 = vpop.f32.mrf.mxu0
    %v183 = vadd.f32 0.0, %v182
    %184 = vmatmul.f32.gmra.mxu0 %v121
    %v185 = vpop.f32.mrf.mxu0
    %v186 = vadd.f32 0.0, %v185
    %187 = vmatmul.f32.gmra.mxu0 %v124
    %v188 = vpop.f32.mrf.mxu0
    %v189 = vadd.f32 0.0, %v188
    %190 = vmatmul.f32.gmra.mxu0 %v127
    %v191 = vpop.f32.mrf.mxu0
    %v192 = vadd.f32 0.0, %v191
    %193 = vmatmul.f32.gmra.mxu0 %v130
    %v194 = vpop.f32.mrf.mxu0
    %v195 = vadd.f32 0.0, %v194
    %196 = vmatmul.f32.gmra.mxu0 %v133
    %v197 = vpop.f32.mrf.mxu0
    %v198 = vadd.f32 0.0, %v197
    %199 = vmatmul.f32.gmra.mxu0 %v136
    %v200 = vpop.f32.mrf.mxu0
    %v201 = vadd.f32 0.0, %v200
    %202 = vmatmul.f32.gmra.mxu0 %v139
    %v203 = vpop.f32.mrf.mxu0
    %v204 = vadd.f32 0.0, %v203
    %205 = vmatmul.f32.gmra.mxu0 %v142
    %v206 = vpop.f32.mrf.mxu0
    %v207 = vadd.f32 0.0, %v206
    %208 = vmatmul.f32.gmra.mxu0 %v145
    %v209 = vpop.f32.mrf.mxu0
    %v210 = vadd.f32 0.0, %v209
    %211 = vmatmul.f32.gmra.mxu0 %v148
    %v212 = vpop.f32.mrf.mxu0
    %v213 = vadd.f32 0.0, %v212
    %214 = vmatmul.f32.gmra.mxu0 %v151
    %v215 = vpop.f32.mrf.mxu0
    %v216 = vadd.f32 0.0, %v215
    %217 = vmatmul.f32.gmra.mxu0 %v154
    %v218 = vpop.f32.mrf.mxu0
    %v219 = vadd.f32 0.0, %v218
    %220 = vmatmul.f32.gmra.mxu0 %v157
    %v221 = vpop.f32.mrf.mxu0
    %v222 = vadd.f32 0.0, %v221
    %223 = vdwg.mxu0
    %v224 = vmul.f32 %v77, %v177
    %v225 = vmul.f32 %v78, %v180
    %v226 = vmul.f32 %v79, %v183
    %v227 = vmul.f32 %v80, %v186
    %v228 = vmul.f32 %v81, %v189
    %v229 = vmul.f32 %v82, %v192
    %v230 = vmul.f32 %v83, %v195
    %v231 = vmul.f32 %v84, %v198
    %v232 = vmul.f32 %v85, %v201
    %v233 = vmul.f32 %v86, %v204
    %v234 = vmul.f32 %v87, %v207
    %v235 = vmul.f32 %v88, %v210
    %v236 = vmul.f32 %v89, %v213
    %v237 = vmul.f32 %v90, %v216
    %v238 = vmul.f32 %v91, %v219
    %v239 = vmul.f32 %v92, %v222
    %v240 = vld [vmem:[%s4] sm:$0xff]
    %vm241 = vcmask 523264
    %v243 = vsel %vm241, %v240, 0
    %v246 = vsel %vm241, %v224, 0
    %v249 = vsel %vm241, %v225, 0
    %v252 = vsel %vm241, %v226, 0
    %v255 = vsel %vm241, %v227, 0
    %v258 = vsel %vm241, %v228, 0
    %v261 = vsel %vm241, %v229, 0
    %v264 = vsel %vm241, %v230, 0
    %v267 = vsel %vm241, %v231, 0
    %v270 = vsel %vm241, %v232, 0
    %v273 = vsel %vm241, %v233, 0
    %v276 = vsel %vm241, %v234, 0
    %v279 = vsel %vm241, %v235, 0
    %v282 = vsel %vm241, %v236, 0
    %v285 = vsel %vm241, %v237, 0
    %v288 = vsel %vm241, %v238, 0
    %v291 = vsel %vm241, %v239, 0
    %293 = vmatpush.xpose.msra.mxu0 %v291
    %294 = vmatpush.xpose.msra.mxu0 %v288
    %295 = vmatpush.xpose.msra.mxu0 %v285
    %296 = vmatpush.xpose.msra.mxu0 %v282
    %297 = vmatpush.xpose.msra.mxu0 %v279
    %298 = vmatpush.xpose.msra.mxu0 %v276
    %299 = vmatpush.xpose.msra.mxu0 %v273
    %300 = vmatpush.xpose.msra.mxu0 %v270
    %301 = vmatpush.xpose.msra.mxu0 %v267
    %302 = vmatpush.xpose.msra.mxu0 %v264
    %303 = vmatpush.xpose.msra.mxu0 %v261
    %304 = vmatpush.xpose.msra.mxu0 %v258
    %305 = vmatpush.xpose.msra.mxu0 %v255
    %306 = vmatpush.xpose.msra.mxu0 %v252
    %307 = vmatpush.xpose.msra.mxu0 %v249
    %308 = vmatpush.xpose.msra.mxu0 %v246
    %309 = vmatmul.f32.gmra.mxu0 %v243
    %v310 = vpop.f32.mrf.mxu0
    %v311 = vadd.f32 0.0, %v310
    %312 = vdwg.mxu0
    %v313 = vmul.f32 %v224, %v224
    %v314 = vmul.f32 %v225, %v225
    %v315 = vmul.f32 %v226, %v226
    %v316 = vmul.f32 %v227, %v227
    %v317 = vmul.f32 %v228, %v228
    %v318 = vmul.f32 %v229, %v229
    %v319 = vmul.f32 %v230, %v230
    %v320 = vmul.f32 %v231, %v231
    %v321 = vmul.f32 %v232, %v232
    %v322 = vmul.f32 %v233, %v233
    %v323 = vmul.f32 %v234, %v234
    %v324 = vmul.f32 %v235, %v235
    %v325 = vmul.f32 %v236, %v236
    %v326 = vmul.f32 %v237, %v237
    %v327 = vmul.f32 %v238, %v238
    %v328 = vmul.f32 %v239, %v239
    %v330 = vsel %vm241, %v313, 0
    %v333 = vsel %vm241, %v314, 0
    %v336 = vsel %vm241, %v315, 0
    %v339 = vsel %vm241, %v316, 0
    %v342 = vsel %vm241, %v317, 0
    %v345 = vsel %vm241, %v318, 0
    %v348 = vsel %vm241, %v319, 0
    %v351 = vsel %vm241, %v320, 0
    %v354 = vsel %vm241, %v321, 0
    %v357 = vsel %vm241, %v322, 0
    %v360 = vsel %vm241, %v323, 0
    %v363 = vsel %vm241, %v324, 0
    %v366 = vsel %vm241, %v325, 0
    %v369 = vsel %vm241, %v326, 0
    %v372 = vsel %vm241, %v327, 0
    %v375 = vsel %vm241, %v328, 0
    %377 = vmatpush.xpose.msra.mxu0 %v375
    %378 = vmatpush.xpose.msra.mxu0 %v372
    %379 = vmatpush.xpose.msra.mxu0 %v369
    %380 = vmatpush.xpose.msra.mxu0 %v366
    %381 = vmatpush.xpose.msra.mxu0 %v363
    %382 = vmatpush.xpose.msra.mxu0 %v360
    %383 = vmatpush.xpose.msra.mxu0 %v357
    %384 = vmatpush.xpose.msra.mxu0 %v354
    %385 = vmatpush.xpose.msra.mxu0 %v351
    %386 = vmatpush.xpose.msra.mxu0 %v348
    %387 = vmatpush.xpose.msra.mxu0 %v345
    %388 = vmatpush.xpose.msra.mxu0 %v342
    %389 = vmatpush.xpose.msra.mxu0 %v339
    %390 = vmatpush.xpose.msra.mxu0 %v336
    %391 = vmatpush.xpose.msra.mxu0 %v333
    %392 = vmatpush.xpose.msra.mxu0 %v330
    %393 = vmatmul.f32.gmra.mxu0 %v243
    %v394 = vpop.f32.mrf.mxu0
    %v395 = vadd.f32 0.0, %v394
    %396 = vdwg.mxu0
    %v397 = vmul.f32 %v311, %v311
    %v398 = vsub.f32 %v397, %v395
    %v399 = vrot.slane %v398, 4
    %v400 = vadd.f32 %v398, %v399
    %v401 = vrot.slane %v400, 2
    %v402 = vadd.f32 %v400, %v401
    %v403 = vrot.slane %v402, 1
    %v404 = vadd.f32 %v402, %v403
    %v405 = vmul.f32 %v404, 0.5
    %v406 = vld [vmem:[%s5] sm:$0xff]
    %v407 = vld [vmem:[%s5 + $0x8] sm:$0xff]
    %v408 = vld [vmem:[%s5 + $0x10] sm:$0xff]
    %v409 = vld [vmem:[%s5 + $0x18] sm:$0xff]
    %v410 = vld [vmem:[%s6] sm:$0xff]
    %v411 = vld [vmem:[%s6 + $0x8] sm:$0xff]
    %v412 = vld [vmem:[%s6 + $0x10] sm:$0xff]
    %v413 = vld [vmem:[%s6 + $0x18] sm:$0xff]
    %415 = vset.pattern.permute.xlu0 0
    %416 = vperm.xlu0 %415, %v410
    %v417 = vpop.permute.xlu0 %416
    %420 = vset.pattern.permute.xlu0 0
    %421 = vperm.xlu0 %420, %v411
    %v422 = vpop.permute.xlu0 %421
    %425 = vset.pattern.permute.xlu0 0
    %426 = vperm.xlu0 %425, %v412
    %v427 = vpop.permute.xlu0 %426
    %430 = vset.pattern.permute.xlu0 0
    %431 = vperm.xlu0 %430, %v413
    %v432 = vpop.permute.xlu0 %431
    %v435 = vsel %vm241, %v406, 0
    %v438 = vsel %vm241, %v407, 0
    %v441 = vsel %vm241, %v408, 0
    %v444 = vsel %vm241, %v409, 0
    %v447 = vsel %vm241, %v77, 0
    %v450 = vsel %vm241, %v78, 0
    %v453 = vsel %vm241, %v79, 0
    %v456 = vsel %vm241, %v80, 0
    %v459 = vsel %vm241, %v81, 0
    %v462 = vsel %vm241, %v82, 0
    %v465 = vsel %vm241, %v83, 0
    %v468 = vsel %vm241, %v84, 0
    %v471 = vsel %vm241, %v85, 0
    %v474 = vsel %vm241, %v86, 0
    %v477 = vsel %vm241, %v87, 0
    %v480 = vsel %vm241, %v88, 0
    %v483 = vsel %vm241, %v89, 0
    %v486 = vsel %vm241, %v90, 0
    %v489 = vsel %vm241, %v91, 0
    %v492 = vsel %vm241, %v92, 0
    %494 = vmatpush.xpose.msra.mxu0 %v492
    %495 = vmatpush.xpose.msra.mxu0 %v489
    %496 = vmatpush.xpose.msra.mxu0 %v486
    %497 = vmatpush.xpose.msra.mxu0 %v483
    %498 = vmatpush.xpose.msra.mxu0 %v480
    %499 = vmatpush.xpose.msra.mxu0 %v477
    %500 = vmatpush.xpose.msra.mxu0 %v474
    %501 = vmatpush.xpose.msra.mxu0 %v471
    %502 = vmatpush.xpose.msra.mxu0 %v468
    %503 = vmatpush.xpose.msra.mxu0 %v465
    %504 = vmatpush.xpose.msra.mxu0 %v462
    %505 = vmatpush.xpose.msra.mxu0 %v459
    %506 = vmatpush.xpose.msra.mxu0 %v456
    %507 = vmatpush.xpose.msra.mxu0 %v453
    %508 = vmatpush.xpose.msra.mxu0 %v450
    %509 = vmatpush.xpose.msra.mxu0 %v447
    %510 = vmatmul.f32.gmra.mxu0 %v435
    %v511 = vpop.f32.mrf.mxu0
    %v512 = vadd.f32 %v417, %v511
    %513 = vmatmul.f32.gmra.mxu0 %v438
    %v514 = vpop.f32.mrf.mxu0
    %v515 = vadd.f32 %v422, %v514
    %516 = vmatmul.f32.gmra.mxu0 %v441
    %v517 = vpop.f32.mrf.mxu0
    %v518 = vadd.f32 %v427, %v517
    %519 = vmatmul.f32.gmra.mxu0 %v444
    %v520 = vpop.f32.mrf.mxu0
    %v521 = vadd.f32 %v432, %v520
    %522 = vdwg.mxu0
    %v523 = vmax.f32 %v512, 0.0
    %v524 = vmax.f32 %v515, 0.0
    %v525 = vmax.f32 %v518, 0.0
    %v526 = vmax.f32 %v521, 0.0
    %v527 = vld [vmem:[%s7] sm:$0xff]
    %v528 = vld [vmem:[%s7 + $0x8] sm:$0xff]
    %v529 = vld [vmem:[%s7 + $0x10] sm:$0xff]
    %v530 = vld [vmem:[%s7 + $0x18] sm:$0xff]
    %v531 = vld [vmem:[%s8] sm:$0xff]
    %v532 = vld [vmem:[%s8 + $0x8] sm:$0xff]
    %v533 = vld [vmem:[%s8 + $0x10] sm:$0xff]
    %v534 = vld [vmem:[%s8 + $0x18] sm:$0xff]
    %536 = vset.pattern.permute.xlu0 0
    %537 = vperm.xlu0 %536, %v531
    %v538 = vpop.permute.xlu0 %537
    %541 = vset.pattern.permute.xlu0 0
    %542 = vperm.xlu0 %541, %v532
    %v543 = vpop.permute.xlu0 %542
    %546 = vset.pattern.permute.xlu0 0
    %547 = vperm.xlu0 %546, %v533
    %v548 = vpop.permute.xlu0 %547
    %551 = vset.pattern.permute.xlu0 0
    %552 = vperm.xlu0 %551, %v534
    %v553 = vpop.permute.xlu0 %552
    %vm555 = vcmask 261120
    %v557 = vsel %vm555, %v527, 0
    %v560 = vsel %vm555, %v528, 0
    %v563 = vsel %vm555, %v529, 0
    %v566 = vsel %vm555, %v530, 0
    %568 = vmatpush.msra.mxu0 0.0
    %569 = vmatpush.msra.mxu0 0.0
    %570 = vmatpush.msra.mxu0 0.0
    %571 = vmatpush.msra.mxu0 0.0
    %572 = vmatpush.msra.mxu0 0.0
    %573 = vmatpush.msra.mxu0 0.0
    %574 = vmatpush.msra.mxu0 0.0
    %575 = vmatpush.msra.mxu0 0.0
    %576 = vmatpush.msra.mxu0 0.0
    %577 = vmatpush.msra.mxu0 0.0
    %578 = vmatpush.msra.mxu0 0.0
    %579 = vmatpush.msra.mxu0 0.0
    %580 = vmatpush.msra.mxu0 %v526
    %581 = vmatpush.msra.mxu0 %v525
    %582 = vmatpush.msra.mxu0 %v524
    %583 = vmatpush.msra.mxu0 %v523
    %584 = vmatmul.f32.gmra.mxu0 %v557
    %v585 = vpop.f32.mrf.mxu0
    %v586 = vadd.f32 %v538, %v585
    %587 = vmatmul.f32.gmra.mxu0 %v560
    %v588 = vpop.f32.mrf.mxu0
    %v589 = vadd.f32 %v543, %v588
    %590 = vmatmul.f32.gmra.mxu0 %v563
    %v591 = vpop.f32.mrf.mxu0
    %v592 = vadd.f32 %v548, %v591
    %593 = vmatmul.f32.gmra.mxu0 %v566
    %v594 = vpop.f32.mrf.mxu0
    %v595 = vadd.f32 %v553, %v594
    %596 = vdwg.mxu0
    %v597 = vmax.f32 %v586, 0.0
    %v598 = vmax.f32 %v589, 0.0
    %v599 = vmax.f32 %v592, 0.0
    %v600 = vmax.f32 %v595, 0.0
    %v601 = vld [vmem:[%s9] sm:$0xff]
    %v602 = vld [vmem:[%s9 + $0x8] sm:$0xff]
    %v603 = vld [vmem:[%s9 + $0x10] sm:$0xff]
    %v604 = vld [vmem:[%s9 + $0x18] sm:$0xff]
    %v605 = vld [vmem:[%s10] sm:$0xff]
    %v606 = vld [vmem:[%s10 + $0x8] sm:$0xff]
    %v607 = vld [vmem:[%s10 + $0x10] sm:$0xff]
    %v608 = vld [vmem:[%s10 + $0x18] sm:$0xff]
    %610 = vset.pattern.permute.xlu0 0
    %611 = vperm.xlu0 %610, %v605
    %v612 = vpop.permute.xlu0 %611
    %615 = vset.pattern.permute.xlu0 0
    %616 = vperm.xlu0 %615, %v606
    %v617 = vpop.permute.xlu0 %616
    %620 = vset.pattern.permute.xlu0 0
    %621 = vperm.xlu0 %620, %v607
    %v622 = vpop.permute.xlu0 %621
    %625 = vset.pattern.permute.xlu0 0
    %626 = vperm.xlu0 %625, %v608
    %v627 = vpop.permute.xlu0 %626
    %v630 = vsel %vm555, %v601, 0
    %v633 = vsel %vm555, %v602, 0
    %v636 = vsel %vm555, %v603, 0
    %v639 = vsel %vm555, %v604, 0
    %641 = vmatpush.msra.mxu0 0.0
    %642 = vmatpush.msra.mxu0 0.0
    %643 = vmatpush.msra.mxu0 0.0
    %644 = vmatpush.msra.mxu0 0.0
    %645 = vmatpush.msra.mxu0 0.0
    %646 = vmatpush.msra.mxu0 0.0
    %647 = vmatpush.msra.mxu0 0.0
    %648 = vmatpush.msra.mxu0 0.0
    %649 = vmatpush.msra.mxu0 0.0
    %650 = vmatpush.msra.mxu0 0.0
    %651 = vmatpush.msra.mxu0 0.0
    %652 = vmatpush.msra.mxu0 0.0
    %653 = vmatpush.msra.mxu0 %v600
    %654 = vmatpush.msra.mxu0 %v599
    %655 = vmatpush.msra.mxu0 %v598
    %656 = vmatpush.msra.mxu0 %v597
    %657 = vmatmul.f32.gmra.mxu0 %v630
    %v658 = vpop.f32.mrf.mxu0
    %v659 = vadd.f32 %v612, %v658
    %660 = vmatmul.f32.gmra.mxu0 %v633
    %v661 = vpop.f32.mrf.mxu0
    %v662 = vadd.f32 %v617, %v661
    %663 = vmatmul.f32.gmra.mxu0 %v636
    %v664 = vpop.f32.mrf.mxu0
    %v665 = vadd.f32 %v622, %v664
    %666 = vmatmul.f32.gmra.mxu0 %v639
    %v667 = vpop.f32.mrf.mxu0
    %v668 = vadd.f32 %v627, %v667
    %669 = vdwg.mxu0
    %v670 = vmax.f32 %v659, 0.0
    %v671 = vmax.f32 %v662, 0.0
    %v672 = vmax.f32 %v665, 0.0
    %v673 = vmax.f32 %v668, 0.0
    %v674 = vld [vmem:[%s12] sm:$0x1]
    %v676 = vsel %vm110, 1.0, 0
    %v679 = vsel %vm110, %v93, 0
    %v682 = vsel %vm110, %v94, 0
    %v685 = vsel %vm110, %v95, 0
    %v688 = vsel %vm110, %v96, 0
    %v691 = vsel %vm110, %v97, 0
    %v694 = vsel %vm110, %v98, 0
    %v697 = vsel %vm110, %v99, 0
    %v700 = vsel %vm110, %v100, 0
    %v703 = vsel %vm110, %v101, 0
    %v706 = vsel %vm110, %v102, 0
    %v709 = vsel %vm110, %v103, 0
    %v712 = vsel %vm110, %v104, 0
    %v715 = vsel %vm110, %v105, 0
    %v718 = vsel %vm110, %v106, 0
    %v721 = vsel %vm110, %v107, 0
    %v724 = vsel %vm110, %v108, 0
    %726 = vmatpush.xpose.msra.mxu0 %v724
    %727 = vmatpush.xpose.msra.mxu0 %v721
    %728 = vmatpush.xpose.msra.mxu0 %v718
    %729 = vmatpush.xpose.msra.mxu0 %v715
    %730 = vmatpush.xpose.msra.mxu0 %v712
    %731 = vmatpush.xpose.msra.mxu0 %v709
    %732 = vmatpush.xpose.msra.mxu0 %v706
    %733 = vmatpush.xpose.msra.mxu0 %v703
    %734 = vmatpush.xpose.msra.mxu0 %v700
    %735 = vmatpush.xpose.msra.mxu0 %v697
    %736 = vmatpush.xpose.msra.mxu0 %v694
    %737 = vmatpush.xpose.msra.mxu0 %v691
    %738 = vmatpush.xpose.msra.mxu0 %v688
    %739 = vmatpush.xpose.msra.mxu0 %v685
    %740 = vmatpush.xpose.msra.mxu0 %v682
    %741 = vmatpush.xpose.msra.mxu0 %v679
    %742 = vmatmul.f32.gmra.mxu0 %v676
    %v743 = vpop.f32.mrf.mxu0
    %v744 = vadd.f32 %v405, %v743
    %745 = vdwg.mxu0
    %747 = vset.pattern.permute.xlu0 0
    %748 = vperm.xlu0 %747, %v674
    %v749 = vpop.permute.xlu0 %748
    %v751 = vperm.slane %v749, 0
    %v752 = vmul.f32 %v744, %v751
    %v753 = vld [vmem:[%s11] sm:$0x1]
    %v755 = vsel %vm555, %v753, 0
    %757 = vmatpush.msra.mxu0 0.0
    %758 = vmatpush.msra.mxu0 0.0
    %759 = vmatpush.msra.mxu0 0.0
    %760 = vmatpush.msra.mxu0 0.0
    %761 = vmatpush.msra.mxu0 0.0
    %762 = vmatpush.msra.mxu0 0.0
    %763 = vmatpush.msra.mxu0 0.0
    %764 = vmatpush.msra.mxu0 0.0
    %765 = vmatpush.msra.mxu0 0.0
    %766 = vmatpush.msra.mxu0 0.0
    %767 = vmatpush.msra.mxu0 0.0
    %768 = vmatpush.msra.mxu0 0.0
    %769 = vmatpush.msra.mxu0 %v673
    %770 = vmatpush.msra.mxu0 %v672
    %771 = vmatpush.msra.mxu0 %v671
    %772 = vmatpush.msra.mxu0 %v670
    %773 = vmatmul.f32.gmra.mxu0 %v755
    %v774 = vpop.f32.mrf.mxu0
    %v775 = vadd.f32 0.0, %v774
    %776 = vdwg.mxu0
    %v777 = vadd.f32 %v752, %v775
    %778 = vset.pattern.permute.xlu0 1
    %779 = vperm.xlu0 %778, %v674
    %v780 = vpop.permute.xlu0 %779
    %v782 = vperm.slane %v780, 0
    %v783 = vadd.f32 %v777, %v782
    %v784 = vxor.u32 %v783, 2147483648
    %v785 = vmul.f32 %v784, 1.442695
    %v786 = vpow.pop %v785
    %v787 = vadd.f32 %v786, 1.0
    %v788 = vrcp.pop %v787
    %v789 = vmul.f32 %v787, %v788
    %v790 = vsub.f32 1.0, %v789
    %v791 = vmul.f32 %v788, %v790
    %v792 = vadd.f32 %v788, %v791
    %vm793 = vweird.f32 %v787
    %vm794 = vweird.f32 %v788
    %vm795 = vmor %vm793, %vm794
    %v796 = vsel %vm795, %v788, %v792
    %v797 = vand.u32 2147483647, %v787
    %vm798 = vcmp.eq.f32.partialorder %v797, 8.507059e+37
    %v799 = vand.u32 %v787, 2147483648
    %v800 = vor.u32 1.1754944e-38, %v799
    %v801 = vsel %vm798, %v800, %v796
    %v802 = vmul.f32 1.0, %v801
    %803 = vst [vmem:[#allocation2] sm:$0x1] %v802
    // Predicated region
    $region54: #{tpu_custom_call.1} parent=1 // pred_check
      _
    $region55: #{tpu_custom_call.1} parent=1 // pred_check_branch
      %805 = sbr.rel (0) target = $region57
    $region56: #{tpu_custom_call.1} parent=1 // pred_region
      %807 = vsyncadd [#allocation3], 0
      %s809 = sshll.u32 [#allocation2], 4
      %s810 = int_to_ptr.vmem [resolvable:$true] %s809
      %s811 = sshll.u32 %s13, 4
      %s812 = int_to_ptr.hbm [resolvable:$true] %s811
      %814 = dma.vmem_to_hbm [thread:$0]  %s810, 16, %s812, [#allocation3]
    $region57: #{tpu_custom_call.1} parent=1 // pred_fallthru
      _
    // Predicated region
    $region58: #{tpu_custom_call.1} parent=1 // pred_check
      _
    $region59: #{tpu_custom_call.1} parent=1 // pred_check_branch
      %816 = sbr.rel (0) target = $region61
    $region60: #{tpu_custom_call.1} parent=1 // pred_region
      %818 = dma.done [#allocation3], 16
    $region61: #{tpu_custom_call.1} parent=1 // pred_fallthru
      _
    %819 = vsyncpa [#allocation3], 1

</llo_original>
